<compile_context>
chip_gen: v5e
topology: v5e:2x2
jax: 0.10.0
libtpu: 0.0.40
codegen_flags: <defaults>
</compile_context>

<pallas_src>
import functools

import jax
import jax.numpy as jnp
import numpy as np
from jax.experimental import pallas as pl
from jax.experimental.pallas import tpu as pltpu


def _res_rnn_kernel(x_ref, w1x_ref, w1s_ref, w2s_ref, b1_ref, b2s_ref, s0_ref,
                    out_ref, xproj_sc, linx_sc, stream_sc,
                    *, linearity, seq_len, has_tail, unroll):
    """One time-chunk of the ResRnn recurrence.

    x_ref      : (T*B, iw) f32   this chunk's input rows (time-major, B padded)
    w1x_ref    : (iw, W)   bf16  rows of W1^T hit by x_t
    w1s_ref    : (sw, W)   bf16  rows of W1^T hit by the carried state
    w2s_ref    : (W,  W)   bf16  (1 - linearity) * W2^T
    b1_ref     : (1,  W)   f32
    b2s_ref    : (1,  W)   f32   (1 - linearity) * b2
    s0_ref     : (1,  W)   f32   [(1 - linearity)*initial_state, zeros(iw)]
    out_ref    : (B,  W)   f32   final stream (written on the last chunk only)
    xproj_sc   : (T*B, W)  f32   per-chunk hoisted x projection
    linx_sc    : (T*B, iw) f32   per-chunk linearity * x
    stream_sc  : (B,  W)   f32   stream carried across chunks (grid steps)
    """
    B, W = out_ref.shape
    TB, iw = x_ref.shape
    sw = W - iw
    T = TB // B
    cdtype = w1s_ref.dtype  # bf16 compute dtype for the MXU

    c = pl.program_id(0)

    # Initialise the carried stream at the first chunk.
    @pl.when(c == 0)
    def _():
        stream_sc[...] = jnp.broadcast_to(s0_ref[...], (B, W))

    # ---- Per-chunk hoisted pre-pass (off the serial chain) ----------------
    # xproj[t] = x_t @ W1^T[:iw] + b1   (one batched MXU matmul per chunk)
    xproj_sc[...] = (
        jnp.dot(x_ref[...].astype(cdtype), w1x_ref[...],
                preferred_element_type=jnp.float32)
        + b1_ref[...])
    # linx[t] = linearity * x_t          (residual x term, pre-scaled)
    linx_sc[...] = linearity * x_ref[...]

    # Loop-invariant operands in vregs.  (At W = 32 this is a handful of
    # vregs; for W >= ~512 let the dots read the VMEM refs directly instead.)
    w1s = w1s_ref[...]
    w2s = w2s_ref[...]
    b2b = jnp.broadcast_to(b2s_ref[...], (B, W))   # hoisted broadcast (no CSE)

    t0 = c * T

    def step(i, stream):
        row = pl.multiple_of(i * B, 8)             # B is padded to a sublane mult.
        state = stream[:, :sw]                     # (B, sw) in vregs
        h = jnp.maximum(
            xproj_sc[pl.ds(row, B), :]
            + jnp.dot(state.astype(cdtype), w1s,
                      preferred_element_type=jnp.float32),
            0.0)
        y2 = jnp.dot(h.astype(cdtype), w2s,
                     preferred_element_type=jnp.float32)
        # ShiftRight + Res with the (1 - linearity) scale already folded:
        #   stream_t = [lin*x_t | lin*state] + (1-lin)*(h @ W2^T) + (1-lin)*b2
        new = (jnp.concatenate(
                   [linx_sc[pl.ds(row, B), :], linearity * state], axis=-1)
               + y2 + b2b)
        if has_tail:
            # Padded tail steps (t >= S) must not advance the stream.
            new = jnp.where(t0 + i < seq_len, new, stream)
        return new

    stream_last = jax.lax.fori_loop(0, T, step, stream_sc[...], unroll=unroll)
    stream_sc[...] = stream_last

    # Single (final) output store.
    @pl.when(c == pl.num_programs(0) - 1)
    def _():
        out_ref[...] = stream_last.astype(out_ref.dtype)


def res_rnn_forward(x, w1, b1, w2, b2, initial_state,
                    *, input_width, state_width, output_width, linearity,
                    t_chunk=128):
    """Pallas ResRnn forward.  x: (seq, batch, input_width) f32.

    Returns (outputs, states) matching ResRnn.forward(x) with state=None,
    seq_indices=-1: outputs (batch, output_width), states (batch, state_width).
    """
    S, B, iw = x.shape
    assert iw == input_width
    assert S >= 1, "empty sequence has no defined output"
    sw = state_width
    W = iw + sw

    # Pad batch to a sublane multiple (aligned per-step slices) and the
    # sequence to a whole number of time chunks (padded steps are masked).
    B_pad = max(8, ((B + 7) // 8) * 8)
    T = max(1, min(int(t_chunk), S))
    S_pad = ((S + T - 1) // T) * T
    num_chunks = S_pad // T
    has_tail = (S_pad != S)

    x_p = jnp.asarray(x, jnp.float32)
    if S_pad != S or B_pad != B:
        x_p = jnp.pad(x_p, ((0, S_pad - S), (0, B_pad - B), (0, 0)))
    x2d = x_p.reshape(S_pad * B_pad, iw)

    # Wrapper-side, one-time glue: pre-transpose / pre-split W1, fold the
    # (1 - linearity) residual factor into W2^T and b2, cast weights to bf16.
    w1t = jnp.asarray(w1, jnp.float32).T                    # (W, W) = W1^T
    w1x = w1t[:iw, :].astype(jnp.bfloat16)                  # (iw, W)
    w1s = w1t[iw:, :].astype(jnp.bfloat16)                  # (sw, W)
    w2s = ((1.0 - linearity)
           * jnp.asarray(w2, jnp.float32).T).astype(jnp.bfloat16)
    b1_2d = jnp.asarray(b1, jnp.float32).reshape(1, W)
    b2s_2d = ((1.0 - linearity) * jnp.asarray(b2, jnp.float32)).reshape(1, W)
    stream0 = jnp.concatenate(
        [(1.0 - linearity) * jnp.asarray(initial_state, jnp.float32),
         jnp.zeros((iw,), jnp.float32)]).reshape(1, W)

    kernel = functools.partial(
        _res_rnn_kernel,
        linearity=float(linearity),
        seq_len=S,
        has_tail=has_tail,
        unroll=int(min(T, 8)),       # partial unroll: ILP without code blowup
    )

    stream_last = pl.pallas_call(
        kernel,
        out_shape=jax.ShapeDtypeStruct((B_pad, W), jnp.float32),
        grid_spec=pltpu.PrefetchScalarGridSpec(
            num_scalar_prefetch=0,
            grid=(num_chunks,),
            in_specs=[
                pl.BlockSpec((T * B_pad, iw), lambda c: (c, 0)),   # x chunk
                pl.BlockSpec((iw, W), lambda c: (0, 0)),           # W1^T[:iw]
                pl.BlockSpec((sw, W), lambda c: (0, 0)),           # W1^T[iw:]
                pl.BlockSpec((W, W), lambda c: (0, 0)),            # (1-lin)*W2^T
                pl.BlockSpec((1, W), lambda c: (0, 0)),            # b1
                pl.BlockSpec((1, W), lambda c: (0, 0)),            # (1-lin)*b2
                pl.BlockSpec((1, W), lambda c: (0, 0)),            # initial stream row
            ],
            out_specs=pl.BlockSpec((B_pad, W), lambda c: (0, 0)),
            scratch_shapes=[
                pltpu.VMEM((T * B_pad, W), jnp.float32),    # hoisted x-proj
                pltpu.VMEM((T * B_pad, iw), jnp.float32),   # linearity * x
                pltpu.VMEM((B_pad, W), jnp.float32),        # carried stream
            ],
        ),
        compiler_params=pltpu.CompilerParams(
            dimension_semantics=("arbitrary",),
            vmem_limit_bytes=32 * 1024 * 1024),
    )(x2d, w1x, w1s, w2s, b1_2d, b2s_2d, stream0)

    outputs = stream_last[:B, W - output_width:W]
    states = stream_last[:B, :state_width]
    return outputs, states


def res_rnn_reference(x, w1, b1, w2, b2, initial_state,
                      *, input_width, state_width, output_width, linearity):
    """Pure-JAX reference mirroring the PyTorch forward (state=None, seq_indices=-1)."""
    S, B, _ = x.shape
    W = input_width + state_width
    state = jnp.broadcast_to((1.0 - linearity) * initial_state, (B, state_width))
    stream = None
    for t in range(S):
        s_in = jnp.concatenate([x[t], state], axis=-1)                    # ShiftRight
        h = jnp.maximum(
            jnp.dot(s_in, w1.T, precision=jax.lax.Precision.HIGHEST) + b1, 0.0)
        y = jnp.dot(h, w2.T, precision=jax.lax.Precision.HIGHEST) + b2
        stream = linearity * s_in + (1.0 - linearity) * y                 # Res
        state = stream[:, :state_width]
    outputs = stream[:, W - output_width:W]
    states = stream[:, :state_width]
    return outputs, states


if __name__ == "__main__":
    # Module hyper-parameters (small, consistent with ResRnn.__init__).
    input_width = 8
    state_width = 24
    output_width = 16
    stream_width = input_width + state_width      # 32
    linearity = 0.99999
    seq, batch = 8, 8

    key = jax.random.PRNGKey(0)
    k_x, k_w1, k_w2, k_s0 = jax.random.split(key, 4)

    # Deterministic parameter init (shapes from ResRnn/Res __init__).
    xavier_bound = float(np.sqrt(6.0 / (stream_width + stream_width)))    # fc1: xavier_uniform_
    kaiming_bound = float(np.sqrt(6.0 / stream_width))                    # fc2: kaiming_uniform_
    w1 = jax.random.uniform(k_w1, (stream_width, stream_width), jnp.float32,
                            -xavier_bound, xavier_bound)
    w2 = jax.random.uniform(k_w2, (stream_width, stream_width), jnp.float32,
                            -kaiming_bound, kaiming_bound)
    b1 = jnp.zeros((stream_width,), jnp.float32)                          # zeros_
    b2 = jnp.zeros((stream_width,), jnp.float32)                          # zeros_
    # initial_state parameter (module inits it to zeros; random here to exercise
    # the (1 - linearity) * initial_state broadcast path).
    initial_state = jax.random.normal(k_s0, (state_width,), jnp.float32)

    # Example input: (seq, batch, input_width), seq-major as in the PyTorch module.
    x = jax.random.normal(k_x, (seq, batch, input_width), jnp.float32)

    outputs, states = res_rnn_forward(
        x, w1, b1, w2, b2, initial_state,
        input_width=input_width, state_width=state_width,
        output_width=output_width, linearity=linearity)
    jax.block_until_ready((outputs, states))

    ref_outputs, ref_states = res_rnn_reference(
        x, w1, b1, w2, b2, initial_state,
        input_width=input_width, state_width=state_width,
        output_width=output_width, linearity=linearity)

    assert outputs.shape == (batch, output_width)
    assert states.shape == (batch, state_width)
    np.testing.assert_allclose(np.asarray(outputs), np.asarray(ref_outputs),
                               rtol=1e-3, atol=1e-3)
    np.testing.assert_allclose(np.asarray(states), np.asarray(ref_states),
                               rtol=1e-3, atol=1e-3)
    print("KERNEL_OK")
</pallas_src>

<mosaic_0001>
module attributes {stable_mosaic.version = 11 : i64} {
  func.func @_res_rnn_kernel(%arg0: i32, %arg1: memref<64x8xf32, #tpu.memory_space<vmem>>, %arg2: memref<8x32xbf16, #tpu.memory_space<vmem>>, %arg3: memref<24x32xbf16, #tpu.memory_space<vmem>>, %arg4: memref<32x32xbf16, #tpu.memory_space<vmem>>, %arg5: memref<1x32xf32, #tpu.memory_space<vmem>>, %arg6: memref<1x32xf32, #tpu.memory_space<vmem>>, %arg7: memref<1x32xf32, #tpu.memory_space<vmem>>, %arg8: memref<8x32xf32, #tpu.memory_space<vmem>>, %arg9: memref<64x32xf32, #tpu.memory_space<vmem>>, %arg10: memref<64x8xf32, #tpu.memory_space<vmem>>, %arg11: memref<8x32xf32, #tpu.memory_space<vmem>>) attributes {dimension_semantics = [#tpu.dimension_semantics<arbitrary>], iteration_bounds = array<i64: 1>, scalar_prefetch = 0 : i64, scratch_operands = 3 : i64, tpu.core_type = #tpu.core_type<tc>, window_params = [{transform_indices = @transform_0, window_bounds = array<i64: 64, 8>}, {pipeline_mode = #tpu.pipeline_mode<synchronous>, transform_indices = @transform_1, window_bounds = array<i64: 8, 32>}, {pipeline_mode = #tpu.pipeline_mode<synchronous>, transform_indices = @transform_2, window_bounds = array<i64: 24, 32>}, {pipeline_mode = #tpu.pipeline_mode<synchronous>, transform_indices = @transform_3, window_bounds = array<i64: 32, 32>}, {pipeline_mode = #tpu.pipeline_mode<synchronous>, transform_indices = @transform_4, window_bounds = array<i64: 1, 32>}, {pipeline_mode = #tpu.pipeline_mode<synchronous>, transform_indices = @transform_5, window_bounds = array<i64: 1, 32>}, {pipeline_mode = #tpu.pipeline_mode<synchronous>, transform_indices = @transform_6, window_bounds = array<i64: 1, 32>}, {pipeline_mode = #tpu.pipeline_mode<synchronous>, transform_indices = @transform_7, window_bounds = array<i64: 8, 32>}]} {
    %c0_i32 = arith.constant 0 : i32
    %0 = arith.cmpi eq, %arg0, %c0_i32 : i32
    %1 = arith.extui %0 : i1 to i32
    %c0_i32_0 = arith.constant 0 : i32
    %2 = arith.cmpi ne, %1, %c0_i32_0 : i32
    scf.if %2 {
      %c0_82 = arith.constant 0 : index
      %c0_83 = arith.constant 0 : index
      %177 = vector.load %arg7[%c0_82, %c0_83] : memref<1x32xf32, #tpu.memory_space<vmem>>, vector<1x32xf32>
      %178 = vector.shape_cast %177 : vector<1x32xf32> to vector<1x32xf32>
      %179 = vector.broadcast %178 : vector<1x32xf32> to vector<8x32xf32>
      %c0_84 = arith.constant 0 : index
      %c0_85 = arith.constant 0 : index
      %180 = vector.load %arg11[%c0_84, %c0_85] : memref<8x32xf32, #tpu.memory_space<vmem>>, vector<8x32xf32>
      tpu.vector_store %arg11[%c0_84, %c0_85], %179 {strides = array<i32>} : memref<8x32xf32, #tpu.memory_space<vmem>>, vector<8x32xf32>,
    } else {
    }
    %c0 = arith.constant 0 : index
    %c0_1 = arith.constant 0 : index
    %3 = vector.load %arg1[%c0, %c0_1] : memref<64x8xf32, #tpu.memory_space<vmem>>, vector<64x8xf32>
    %4 = arith.truncf %3 : vector<64x8xf32> to vector<64x8xbf16>
    %c0_2 = arith.constant 0 : index
    %c0_3 = arith.constant 0 : index
    %5 = vector.load %arg2[%c0_2, %c0_3] : memref<8x32xbf16, #tpu.memory_space<vmem>>, vector<8x32xbf16>
    %cst = arith.constant dense<0.000000e+00> : vector<64x32xf32>
    %6 = tpu.matmul %4, %5, %cst {dimension_numbers = #tpu.dot_dimension_numbers<[1], [0], [0], [1], [0, 0, 1, 1], [], []>} : vector<64x8xbf16>, vector<8x32xbf16>, vector<64x32xf32> -> vector<64x32xf32>
    %c0_4 = arith.constant 0 : index
    %c0_5 = arith.constant 0 : index
    %7 = vector.load %arg5[%c0_4, %c0_5] : memref<1x32xf32, #tpu.memory_space<vmem>>, vector<1x32xf32>
    %8 = vector.broadcast %7 : vector<1x32xf32> to vector<64x32xf32>
    %9 = arith.addf %6, %8 : vector<64x32xf32>
    %c0_6 = arith.constant 0 : index
    %c0_7 = arith.constant 0 : index
    %10 = vector.load %arg9[%c0_6, %c0_7] : memref<64x32xf32, #tpu.memory_space<vmem>>, vector<64x32xf32>
    tpu.vector_store %arg9[%c0_6, %c0_7], %9 {strides = array<i32>} : memref<64x32xf32, #tpu.memory_space<vmem>>, vector<64x32xf32>,
    %c0_8 = arith.constant 0 : index
    %c0_9 = arith.constant 0 : index
    %11 = vector.load %arg1[%c0_8, %c0_9] : memref<64x8xf32, #tpu.memory_space<vmem>>, vector<64x8xf32>
    %cst_10 = arith.constant 0.999989986 : f32
    %12 = vector.broadcast %cst_10 : f32 to vector<64x8xf32>
    %13 = arith.mulf %12, %11 : vector<64x8xf32>
    %c0_11 = arith.constant 0 : index
    %c0_12 = arith.constant 0 : index
    %14 = vector.load %arg10[%c0_11, %c0_12] : memref<64x8xf32, #tpu.memory_space<vmem>>, vector<64x8xf32>
    tpu.vector_store %arg10[%c0_11, %c0_12], %13 {strides = array<i32>} : memref<64x8xf32, #tpu.memory_space<vmem>>, vector<64x8xf32>,
    %c0_13 = arith.constant 0 : index
    %c0_14 = arith.constant 0 : index
    %15 = vector.load %arg3[%c0_13, %c0_14] : memref<24x32xbf16, #tpu.memory_space<vmem>>, vector<24x32xbf16>
    %c0_15 = arith.constant 0 : index
    %c0_16 = arith.constant 0 : index
    %16 = vector.load %arg4[%c0_15, %c0_16] : memref<32x32xbf16, #tpu.memory_space<vmem>>, vector<32x32xbf16>
    %c0_17 = arith.constant 0 : index
    %c0_18 = arith.constant 0 : index
    %17 = vector.load %arg6[%c0_17, %c0_18] : memref<1x32xf32, #tpu.memory_space<vmem>>, vector<1x32xf32>
    %18 = vector.shape_cast %17 : vector<1x32xf32> to vector<1x32xf32>
    %19 = vector.broadcast %18 : vector<1x32xf32> to vector<8x32xf32>
    %c0_19 = arith.constant 0 : index
    %c0_20 = arith.constant 0 : index
    %20 = vector.load %arg11[%c0_19, %c0_20] : memref<8x32xf32, #tpu.memory_space<vmem>>, vector<8x32xf32>
    %c0_i32_21 = arith.constant 0 : i32
    %c8_i32 = arith.constant 8 : i32
    %21 = arith.muli %c0_i32_21, %c8_i32 : i32
    %22 = tpu.assume_multiple %21, 8 : i32
    %23 = vector.extract_strided_slice %20 {offsets = [0, 0], sizes = [8, 24], strides = [1, 1]} : vector<8x32xf32> to vector<8x24xf32>
    %24 = arith.index_cast %22 : i32 to index
    %c0_22 = arith.constant 0 : index
    %25 = vector.load %arg9[%24, %c0_22] : memref<64x32xf32, #tpu.memory_space<vmem>>, vector<8x32xf32>
    %26 = arith.truncf %23 : vector<8x24xf32> to vector<8x24xbf16>
    %cst_23 = arith.constant dense<0.000000e+00> : vector<8x32xf32>
    %27 = tpu.matmul %26, %15, %cst_23 {dimension_numbers = #tpu.dot_dimension_numbers<[1], [0], [0], [1], [0, 0, 1, 1], [], []>} : vector<8x24xbf16>, vector<24x32xbf16>, vector<8x32xf32> -> vector<8x32xf32>
    %28 = arith.addf %25, %27 : vector<8x32xf32>
    %cst_24 = arith.constant 0.000000e+00 : f32
    %29 = vector.broadcast %cst_24 : f32 to vector<8x32xf32>
    %30 = arith.maximumf %28, %29 : vector<8x32xf32>
    %31 = arith.truncf %30 : vector<8x32xf32> to vector<8x32xbf16>
    %cst_25 = arith.constant dense<0.000000e+00> : vector<8x32xf32>
    %32 = tpu.matmul %31, %16, %cst_25 {dimension_numbers = #tpu.dot_dimension_numbers<[1], [0], [0], [1], [0, 0, 1, 1], [], []>} : vector<8x32xbf16>, vector<32x32xbf16>, vector<8x32xf32> -> vector<8x32xf32>
    %33 = arith.index_cast %22 : i32 to index
    %c0_26 = arith.constant 0 : index
    %34 = vector.load %arg10[%33, %c0_26] : memref<64x8xf32, #tpu.memory_space<vmem>>, vector<8x8xf32>
    %cst_27 = arith.constant 0.999989986 : f32
    %35 = vector.broadcast %cst_27 : f32 to vector<8x24xf32>
    %36 = arith.mulf %35, %23 : vector<8x24xf32>
    %37 = tpu.concatenate %34, %36 in 1 : vector<8x8xf32>, vector<8x24xf32> -> vector<8x32xf32>
    %38 = arith.addf %37, %32 : vector<8x32xf32>
    %39 = arith.addf %38, %19 : vector<8x32xf32>
    %c1_i32 = arith.constant 1 : i32
    %c8_i32_28 = arith.constant 8 : i32
    %40 = arith.muli %c1_i32, %c8_i32_28 : i32
    %41 = tpu.assume_multiple %40, 8 : i32
    %42 = vector.extract_strided_slice %39 {offsets = [0, 0], sizes = [8, 24], strides = [1, 1]} : vector<8x32xf32> to vector<8x24xf32>
    %43 = arith.index_cast %41 : i32 to index
    %c0_29 = arith.constant 0 : index
    %44 = vector.load %arg9[%43, %c0_29] : memref<64x32xf32, #tpu.memory_space<vmem>>, vector<8x32xf32>
    %45 = arith.truncf %42 : vector<8x24xf32> to vector<8x24xbf16>
    %cst_30 = arith.constant dense<0.000000e+00> : vector<8x32xf32>
    %46 = tpu.matmul %45, %15, %cst_30 {dimension_numbers = #tpu.dot_dimension_numbers<[1], [0], [0], [1], [0, 0, 1, 1], [], []>} : vector<8x24xbf16>, vector<24x32xbf16>, vector<8x32xf32> -> vector<8x32xf32>
    %47 = arith.addf %44, %46 : vector<8x32xf32>
    %cst_31 = arith.constant 0.000000e+00 : f32
    %48 = vector.broadcast %cst_31 : f32 to vector<8x32xf32>
    %49 = arith.maximumf %47, %48 : vector<8x32xf32>
    %50 = arith.truncf %49 : vector<8x32xf32> to vector<8x32xbf16>
    %cst_32 = arith.constant dense<0.000000e+00> : vector<8x32xf32>
    %51 = tpu.matmul %50, %16, %cst_32 {dimension_numbers = #tpu.dot_dimension_numbers<[1], [0], [0], [1], [0, 0, 1, 1], [], []>} : vector<8x32xbf16>, vector<32x32xbf16>, vector<8x32xf32> -> vector<8x32xf32>
    %52 = arith.index_cast %41 : i32 to index
    %c0_33 = arith.constant 0 : index
    %53 = vector.load %arg10[%52, %c0_33] : memref<64x8xf32, #tpu.memory_space<vmem>>, vector<8x8xf32>
    %cst_34 = arith.constant 0.999989986 : f32
    %54 = vector.broadcast %cst_34 : f32 to vector<8x24xf32>
    %55 = arith.mulf %54, %42 : vector<8x24xf32>
    %56 = tpu.concatenate %53, %55 in 1 : vector<8x8xf32>, vector<8x24xf32> -> vector<8x32xf32>
    %57 = arith.addf %56, %51 : vector<8x32xf32>
    %58 = arith.addf %57, %19 : vector<8x32xf32>
    %c2_i32 = arith.constant 2 : i32
    %c8_i32_35 = arith.constant 8 : i32
    %59 = arith.muli %c2_i32, %c8_i32_35 : i32
    %60 = tpu.assume_multiple %59, 8 : i32
    %61 = vector.extract_strided_slice %58 {offsets = [0, 0], sizes = [8, 24], strides = [1, 1]} : vector<8x32xf32> to vector<8x24xf32>
    %62 = arith.index_cast %60 : i32 to index
    %c0_36 = arith.constant 0 : index
    %63 = vector.load %arg9[%62, %c0_36] : memref<64x32xf32, #tpu.memory_space<vmem>>, vector<8x32xf32>
    %64 = arith.truncf %61 : vector<8x24xf32> to vector<8x24xbf16>
    %cst_37 = arith.constant dense<0.000000e+00> : vector<8x32xf32>
    %65 = tpu.matmul %64, %15, %cst_37 {dimension_numbers = #tpu.dot_dimension_numbers<[1], [0], [0], [1], [0, 0, 1, 1], [], []>} : vector<8x24xbf16>, vector<24x32xbf16>, vector<8x32xf32> -> vector<8x32xf32>
    %66 = arith.addf %63, %65 : vector<8x32xf32>
    %cst_38 = arith.constant 0.000000e+00 : f32
    %67 = vector.broadcast %cst_38 : f32 to vector<8x32xf32>
    %68 = arith.maximumf %66, %67 : vector<8x32xf32>
    %69 = arith.truncf %68 : vector<8x32xf32> to vector<8x32xbf16>
    %cst_39 = arith.constant dense<0.000000e+00> : vector<8x32xf32>
    %70 = tpu.matmul %69, %16, %cst_39 {dimension_numbers = #tpu.dot_dimension_numbers<[1], [0], [0], [1], [0, 0, 1, 1], [], []>} : vector<8x32xbf16>, vector<32x32xbf16>, vector<8x32xf32> -> vector<8x32xf32>
    %71 = arith.index_cast %60 : i32 to index
    %c0_40 = arith.constant 0 : index
    %72 = vector.load %arg10[%71, %c0_40] : memref<64x8xf32, #tpu.memory_space<vmem>>, vector<8x8xf32>
    %cst_41 = arith.constant 0.999989986 : f32
    %73 = vector.broadcast %cst_41 : f32 to vector<8x24xf32>
    %74 = arith.mulf %73, %61 : vector<8x24xf32>
    %75 = tpu.concatenate %72, %74 in 1 : vector<8x8xf32>, vector<8x24xf32> -> vector<8x32xf32>
    %76 = arith.addf %75, %70 : vector<8x32xf32>
    %77 = arith.addf %76, %19 : vector<8x32xf32>
    %c3_i32 = arith.constant 3 : i32
    %c8_i32_42 = arith.constant 8 : i32
    %78 = arith.muli %c3_i32, %c8_i32_42 : i32
    %79 = tpu.assume_multiple %78, 8 : i32
    %80 = vector.extract_strided_slice %77 {offsets = [0, 0], sizes = [8, 24], strides = [1, 1]} : vector<8x32xf32> to vector<8x24xf32>
    %81 = arith.index_cast %79 : i32 to index
    %c0_43 = arith.constant 0 : index
    %82 = vector.load %arg9[%81, %c0_43] : memref<64x32xf32, #tpu.memory_space<vmem>>, vector<8x32xf32>
    %83 = arith.truncf %80 : vector<8x24xf32> to vector<8x24xbf16>
    %cst_44 = arith.constant dense<0.000000e+00> : vector<8x32xf32>
    %84 = tpu.matmul %83, %15, %cst_44 {dimension_numbers = #tpu.dot_dimension_numbers<[1], [0], [0], [1], [0, 0, 1, 1], [], []>} : vector<8x24xbf16>, vector<24x32xbf16>, vector<8x32xf32> -> vector<8x32xf32>
    %85 = arith.addf %82, %84 : vector<8x32xf32>
    %cst_45 = arith.constant 0.000000e+00 : f32
    %86 = vector.broadcast %cst_45 : f32 to vector<8x32xf32>
    %87 = arith.maximumf %85, %86 : vector<8x32xf32>
    %88 = arith.truncf %87 : vector<8x32xf32> to vector<8x32xbf16>
    %cst_46 = arith.constant dense<0.000000e+00> : vector<8x32xf32>
    %89 = tpu.matmul %88, %16, %cst_46 {dimension_numbers = #tpu.dot_dimension_numbers<[1], [0], [0], [1], [0, 0, 1, 1], [], []>} : vector<8x32xbf16>, vector<32x32xbf16>, vector<8x32xf32> -> vector<8x32xf32>
    %90 = arith.index_cast %79 : i32 to index
    %c0_47 = arith.constant 0 : index
    %91 = vector.load %arg10[%90, %c0_47] : memref<64x8xf32, #tpu.memory_space<vmem>>, vector<8x8xf32>
    %cst_48 = arith.constant 0.999989986 : f32
    %92 = vector.broadcast %cst_48 : f32 to vector<8x24xf32>
    %93 = arith.mulf %92, %80 : vector<8x24xf32>
    %94 = tpu.concatenate %91, %93 in 1 : vector<8x8xf32>, vector<8x24xf32> -> vector<8x32xf32>
    %95 = arith.addf %94, %89 : vector<8x32xf32>
    %96 = arith.addf %95, %19 : vector<8x32xf32>
    %c4_i32 = arith.constant 4 : i32
    %c8_i32_49 = arith.constant 8 : i32
    %97 = arith.muli %c4_i32, %c8_i32_49 : i32
    %98 = tpu.assume_multiple %97, 8 : i32
    %99 = vector.extract_strided_slice %96 {offsets = [0, 0], sizes = [8, 24], strides = [1, 1]} : vector<8x32xf32> to vector<8x24xf32>
    %100 = arith.index_cast %98 : i32 to index
    %c0_50 = arith.constant 0 : index
    %101 = vector.load %arg9[%100, %c0_50] : memref<64x32xf32, #tpu.memory_space<vmem>>, vector<8x32xf32>
    %102 = arith.truncf %99 : vector<8x24xf32> to vector<8x24xbf16>
    %cst_51 = arith.constant dense<0.000000e+00> : vector<8x32xf32>
    %103 = tpu.matmul %102, %15, %cst_51 {dimension_numbers = #tpu.dot_dimension_numbers<[1], [0], [0], [1], [0, 0, 1, 1], [], []>} : vector<8x24xbf16>, vector<24x32xbf16>, vector<8x32xf32> -> vector<8x32xf32>
    %104 = arith.addf %101, %103 : vector<8x32xf32>
    %cst_52 = arith.constant 0.000000e+00 : f32
    %105 = vector.broadcast %cst_52 : f32 to vector<8x32xf32>
    %106 = arith.maximumf %104, %105 : vector<8x32xf32>
    %107 = arith.truncf %106 : vector<8x32xf32> to vector<8x32xbf16>
    %cst_53 = arith.constant dense<0.000000e+00> : vector<8x32xf32>
    %108 = tpu.matmul %107, %16, %cst_53 {dimension_numbers = #tpu.dot_dimension_numbers<[1], [0], [0], [1], [0, 0, 1, 1], [], []>} : vector<8x32xbf16>, vector<32x32xbf16>, vector<8x32xf32> -> vector<8x32xf32>
    %109 = arith.index_cast %98 : i32 to index
    %c0_54 = arith.constant 0 : index
    %110 = vector.load %arg10[%109, %c0_54] : memref<64x8xf32, #tpu.memory_space<vmem>>, vector<8x8xf32>
    %cst_55 = arith.constant 0.999989986 : f32
    %111 = vector.broadcast %cst_55 : f32 to vector<8x24xf32>
    %112 = arith.mulf %111, %99 : vector<8x24xf32>
    %113 = tpu.concatenate %110, %112 in 1 : vector<8x8xf32>, vector<8x24xf32> -> vector<8x32xf32>
    %114 = arith.addf %113, %108 : vector<8x32xf32>
    %115 = arith.addf %114, %19 : vector<8x32xf32>
    %c5_i32 = arith.constant 5 : i32
    %c8_i32_56 = arith.constant 8 : i32
    %116 = arith.muli %c5_i32, %c8_i32_56 : i32
    %117 = tpu.assume_multiple %116, 8 : i32
    %118 = vector.extract_strided_slice %115 {offsets = [0, 0], sizes = [8, 24], strides = [1, 1]} : vector<8x32xf32> to vector<8x24xf32>
    %119 = arith.index_cast %117 : i32 to index
    %c0_57 = arith.constant 0 : index
    %120 = vector.load %arg9[%119, %c0_57] : memref<64x32xf32, #tpu.memory_space<vmem>>, vector<8x32xf32>
    %121 = arith.truncf %118 : vector<8x24xf32> to vector<8x24xbf16>
    %cst_58 = arith.constant dense<0.000000e+00> : vector<8x32xf32>
    %122 = tpu.matmul %121, %15, %cst_58 {dimension_numbers = #tpu.dot_dimension_numbers<[1], [0], [0], [1], [0, 0, 1, 1], [], []>} : vector<8x24xbf16>, vector<24x32xbf16>, vector<8x32xf32> -> vector<8x32xf32>
    %123 = arith.addf %120, %122 : vector<8x32xf32>
    %cst_59 = arith.constant 0.000000e+00 : f32
    %124 = vector.broadcast %cst_59 : f32 to vector<8x32xf32>
    %125 = arith.maximumf %123, %124 : vector<8x32xf32>
    %126 = arith.truncf %125 : vector<8x32xf32> to vector<8x32xbf16>
    %cst_60 = arith.constant dense<0.000000e+00> : vector<8x32xf32>
    %127 = tpu.matmul %126, %16, %cst_60 {dimension_numbers = #tpu.dot_dimension_numbers<[1], [0], [0], [1], [0, 0, 1, 1], [], []>} : vector<8x32xbf16>, vector<32x32xbf16>, vector<8x32xf32> -> vector<8x32xf32>
    %128 = arith.index_cast %117 : i32 to index
    %c0_61 = arith.constant 0 : index
    %129 = vector.load %arg10[%128, %c0_61] : memref<64x8xf32, #tpu.memory_space<vmem>>, vector<8x8xf32>
    %cst_62 = arith.constant 0.999989986 : f32
    %130 = vector.broadcast %cst_62 : f32 to vector<8x24xf32>
    %131 = arith.mulf %130, %118 : vector<8x24xf32>
    %132 = tpu.concatenate %129, %131 in 1 : vector<8x8xf32>, vector<8x24xf32> -> vector<8x32xf32>
    %133 = arith.addf %132, %127 : vector<8x32xf32>
    %134 = arith.addf %133, %19 : vector<8x32xf32>
    %c6_i32 = arith.constant 6 : i32
    %c8_i32_63 = arith.constant 8 : i32
    %135 = arith.muli %c6_i32, %c8_i32_63 : i32
    %136 = tpu.assume_multiple %135, 8 : i32
    %137 = vector.extract_strided_slice %134 {offsets = [0, 0], sizes = [8, 24], strides = [1, 1]} : vector<8x32xf32> to vector<8x24xf32>
    %138 = arith.index_cast %136 : i32 to index
    %c0_64 = arith.constant 0 : index
    %139 = vector.load %arg9[%138, %c0_64] : memref<64x32xf32, #tpu.memory_space<vmem>>, vector<8x32xf32>
    %140 = arith.truncf %137 : vector<8x24xf32> to vector<8x24xbf16>
    %cst_65 = arith.constant dense<0.000000e+00> : vector<8x32xf32>
    %141 = tpu.matmul %140, %15, %cst_65 {dimension_numbers = #tpu.dot_dimension_numbers<[1], [0], [0], [1], [0, 0, 1, 1], [], []>} : vector<8x24xbf16>, vector<24x32xbf16>, vector<8x32xf32> -> vector<8x32xf32>
    %142 = arith.addf %139, %141 : vector<8x32xf32>
    %cst_66 = arith.constant 0.000000e+00 : f32
    %143 = vector.broadcast %cst_66 : f32 to vector<8x32xf32>
    %144 = arith.maximumf %142, %143 : vector<8x32xf32>
    %145 = arith.truncf %144 : vector<8x32xf32> to vector<8x32xbf16>
    %cst_67 = arith.constant dense<0.000000e+00> : vector<8x32xf32>
    %146 = tpu.matmul %145, %16, %cst_67 {dimension_numbers = #tpu.dot_dimension_numbers<[1], [0], [0], [1], [0, 0, 1, 1], [], []>} : vector<8x32xbf16>, vector<32x32xbf16>, vector<8x32xf32> -> vector<8x32xf32>
    %147 = arith.index_cast %136 : i32 to index
    %c0_68 = arith.constant 0 : index
    %148 = vector.load %arg10[%147, %c0_68] : memref<64x8xf32, #tpu.memory_space<vmem>>, vector<8x8xf32>
    %cst_69 = arith.constant 0.999989986 : f32
    %149 = vector.broadcast %cst_69 : f32 to vector<8x24xf32>
    %150 = arith.mulf %149, %137 : vector<8x24xf32>
    %151 = tpu.concatenate %148, %150 in 1 : vector<8x8xf32>, vector<8x24xf32> -> vector<8x32xf32>
    %152 = arith.addf %151, %146 : vector<8x32xf32>
    %153 = arith.addf %152, %19 : vector<8x32xf32>
    %c7_i32 = arith.constant 7 : i32
    %c8_i32_70 = arith.constant 8 : i32
    %154 = arith.muli %c7_i32, %c8_i32_70 : i32
    %155 = tpu.assume_multiple %154, 8 : i32
    %156 = vector.extract_strided_slice %153 {offsets = [0, 0], sizes = [8, 24], strides = [1, 1]} : vector<8x32xf32> to vector<8x24xf32>
    %157 = arith.index_cast %155 : i32 to index
    %c0_71 = arith.constant 0 : index
    %158 = vector.load %arg9[%157, %c0_71] : memref<64x32xf32, #tpu.memory_space<vmem>>, vector<8x32xf32>
    %159 = arith.truncf %156 : vector<8x24xf32> to vector<8x24xbf16>
    %cst_72 = arith.constant dense<0.000000e+00> : vector<8x32xf32>
    %160 = tpu.matmul %159, %15, %cst_72 {dimension_numbers = #tpu.dot_dimension_numbers<[1], [0], [0], [1], [0, 0, 1, 1], [], []>} : vector<8x24xbf16>, vector<24x32xbf16>, vector<8x32xf32> -> vector<8x32xf32>
    %161 = arith.addf %158, %160 : vector<8x32xf32>
    %cst_73 = arith.constant 0.000000e+00 : f32
    %162 = vector.broadcast %cst_73 : f32 to vector<8x32xf32>
    %163 = arith.maximumf %161, %162 : vector<8x32xf32>
    %164 = arith.truncf %163 : vector<8x32xf32> to vector<8x32xbf16>
    %cst_74 = arith.constant dense<0.000000e+00> : vector<8x32xf32>
    %165 = tpu.matmul %164, %16, %cst_74 {dimension_numbers = #tpu.dot_dimension_numbers<[1], [0], [0], [1], [0, 0, 1, 1], [], []>} : vector<8x32xbf16>, vector<32x32xbf16>, vector<8x32xf32> -> vector<8x32xf32>
    %166 = arith.index_cast %155 : i32 to index
    %c0_75 = arith.constant 0 : index
    %167 = vector.load %arg10[%166, %c0_75] : memref<64x8xf32, #tpu.memory_space<vmem>>, vector<8x8xf32>
    %cst_76 = arith.constant 0.999989986 : f32
    %168 = vector.broadcast %cst_76 : f32 to vector<8x24xf32>
    %169 = arith.mulf %168, %156 : vector<8x24xf32>
    %170 = tpu.concatenate %167, %169 in 1 : vector<8x8xf32>, vector<8x24xf32> -> vector<8x32xf32>
    %171 = arith.addf %170, %165 : vector<8x32xf32>
    %172 = arith.addf %171, %19 : vector<8x32xf32>
    %c8_i32_77 = arith.constant 8 : i32
    %c0_78 = arith.constant 0 : index
    %c0_79 = arith.constant 0 : index
    %173 = vector.load %arg11[%c0_78, %c0_79] : memref<8x32xf32, #tpu.memory_space<vmem>>, vector<8x32xf32>
    tpu.vector_store %arg11[%c0_78, %c0_79], %172 {strides = array<i32>} : memref<8x32xf32, #tpu.memory_space<vmem>>, vector<8x32xf32>,
    %c0_i32_80 = arith.constant 0 : i32
    %174 = arith.cmpi eq, %arg0, %c0_i32_80 : i32
    %175 = arith.extui %174 : i1 to i32
    %c0_i32_81 = arith.constant 0 : i32
    %176 = arith.cmpi ne, %175, %c0_i32_81 : i32
    scf.if %176 {
      %c0_82 = arith.constant 0 : index
      %c0_83 = arith.constant 0 : index
      %177 = vector.load %arg8[%c0_82, %c0_83] : memref<8x32xf32, #tpu.memory_space<vmem>>, vector<8x32xf32>
      tpu.vector_store %arg8[%c0_82, %c0_83], %172 {strides = array<i32>} : memref<8x32xf32, #tpu.memory_space<vmem>>, vector<8x32xf32>,
    } else {
    }
    return
  }
  func.func @transform_0(%arg0: i32) -> (i32, i32) {
    %c0_i32 = arith.constant 0 : i32
    %c0_i32_0 = arith.constant 0 : i32
    return %arg0, %c0_i32 : i32, i32
  }
  func.func @transform_1(%arg0: i32) -> (i32, i32) {
    %c0_i32 = arith.constant 0 : i32
    %c0_i32_0 = arith.constant 0 : i32
    %c0_i32_1 = arith.constant 0 : i32
    return %c0_i32, %c0_i32_0 : i32, i32
  }
  func.func @transform_2(%arg0: i32) -> (i32, i32) {
    %c0_i32 = arith.constant 0 : i32
    %c0_i32_0 = arith.constant 0 : i32
    %c0_i32_1 = arith.constant 0 : i32
    return %c0_i32, %c0_i32_0 : i32, i32
  }
  func.func @transform_3(%arg0: i32) -> (i32, i32) {
    %c0_i32 = arith.constant 0 : i32
    %c0_i32_0 = arith.constant 0 : i32
    %c0_i32_1 = arith.constant 0 : i32
    return %c0_i32, %c0_i32_0 : i32, i32
  }
  func.func @transform_4(%arg0: i32) -> (i32, i32) {
    %c0_i32 = arith.constant 0 : i32
    %c0_i32_0 = arith.constant 0 : i32
    %c0_i32_1 = arith.constant 0 : i32
    return %c0_i32, %c0_i32_0 : i32, i32
  }
  func.func @transform_5(%arg0: i32) -> (i32, i32) {
    %c0_i32 = arith.constant 0 : i32
    %c0_i32_0 = arith.constant 0 : i32
    %c0_i32_1 = arith.constant 0 : i32
    return %c0_i32, %c0_i32_0 : i32, i32
  }
  func.func @transform_6(%arg0: i32) -> (i32, i32) {
    %c0_i32 = arith.constant 0 : i32
    %c0_i32_0 = arith.constant 0 : i32
    %c0_i32_1 = arith.constant 0 : i32
    return %c0_i32, %c0_i32_0 : i32, i32
  }
  func.func @transform_7(%arg0: i32) -> (i32, i32) {
    %c0_i32 = arith.constant 0 : i32
    %c0_i32_0 = arith.constant 0 : i32
    %c0_i32_1 = arith.constant 0 : i32
    return %c0_i32, %c0_i32_0 : i32, i32
  }
}

</mosaic_0001>

<llo_original>
// kernel: tpu_custom_call.1
$region0: #{tpu_custom_call.1}
  #allocation0 [shape = 'u32[]', space=smem, size = 0x4, offset = 0x4, fixed_abs, tag = 'smem constant byte address 0x4 - core index']
  #allocation1 [shape = 'u32[72,128]{1,0:T(1,128)}', space=vmem, size = 0x9000, scoped, tag = 'internal scratch']
  #allocation2 [shape = 'f32[64,32]{1,0:T(8,128)}', space=vmem, size = 0x8000, scoped, tag = 'scratch operand']
  #allocation3 [shape = 'f32[64,8]{1,0:T(8,128)}', space=vmem, size = 0x8000, scoped, tag = 'scratch operand']
  #allocation4 [shape = 'f32[8,32]{1,0:T(8,128)}', space=vmem, size = 0x1000, scoped, tag = 'scratch operand']
  %s0 = inlined_call_operand.vmem [shape: f32[64,8], index: 0, kind: input, shape index: {}]
  %s1 = inlined_call_operand.vmem [shape: bf16[8,32], index: 1, kind: input, shape index: {}]
  %s2 = inlined_call_operand.vmem [shape: bf16[24,32], index: 2, kind: input, shape index: {}]
  %s3 = inlined_call_operand.vmem [shape: bf16[32,32], index: 3, kind: input, shape index: {}]
  %s4 = inlined_call_operand.vmem [shape: f32[1,32], index: 4, kind: input, shape index: {}]
  %s5 = inlined_call_operand.vmem [shape: f32[1,32], index: 5, kind: input, shape index: {}]
  %s6 = inlined_call_operand.vmem [shape: f32[1,32], index: 6, kind: input, shape index: {}]
  %s7 = inlined_call_operand.hbm [shape: f32[8,32], index: 7, kind: output, shape index: {}]
  %s8 = sld [smem:[#allocation0]]
  $region46: #{tpu_custom_call.1} parent=0
    _
  %s10 = ssub.s32 1, %s8
  %s11 = scalar_select 0, %s10, %s8
  $region1: #{tpu_custom_call.1} parent=0
    #allocation5 [shape = 'u8[4096]{0}', space=vmem, size = 0x1000, scoped, tag = 'output window, operand 0, single buffered']
    #allocation6 [shape = 's32[1]{0}', space=sflag, size = 0x4, scoped, tag = 'scoped memory for tpu_custom_call.1']
    %12 = vsyncpa [#allocation6], 0
    // Predicated region
    $region2: #{tpu_custom_call.1} parent=1 // pred_check
      _
    $region3: #{tpu_custom_call.1} parent=1 // pred_check_branch
      %14 = sbr.rel (0) target = $region5
    $region4: #{tpu_custom_call.1} parent=1 // pred_region
      _
    $region5: #{tpu_custom_call.1} parent=1 // pred_fallthru
      _
    // Predicated region
    $region6: #{tpu_custom_call.1} parent=1 // pred_check
      _
    $region7: #{tpu_custom_call.1} parent=1 // pred_check_branch
      %16 = sbr.rel (0) target = $region9
    $region8: #{tpu_custom_call.1} parent=1 // pred_region
      _
    $region9: #{tpu_custom_call.1} parent=1 // pred_fallthru
      _
    // Predicated region
    $region10: #{tpu_custom_call.1} parent=1 // pred_check
      _
    $region11: #{tpu_custom_call.1} parent=1 // pred_check_branch
      %18 = sbr.rel (0) target = $region13
    $region12: #{tpu_custom_call.1} parent=1 // pred_region
      _
    $region13: #{tpu_custom_call.1} parent=1 // pred_fallthru
      _
    // Predicated region
    $region14: #{tpu_custom_call.1} parent=1 // pred_check
      _
    $region15: #{tpu_custom_call.1} parent=1 // pred_check_branch
      %20 = sbr.rel (0) target = $region17
    $region16: #{tpu_custom_call.1} parent=1 // pred_region
      _
    $region17: #{tpu_custom_call.1} parent=1 // pred_fallthru
      _
    // Predicated region
    $region18: #{tpu_custom_call.1} parent=1 // pred_check
      _
    $region19: #{tpu_custom_call.1} parent=1 // pred_check_branch
      %22 = sbr.rel (0) target = $region21
    $region20: #{tpu_custom_call.1} parent=1 // pred_region
      _
    $region21: #{tpu_custom_call.1} parent=1 // pred_fallthru
      _
    // Predicated region
    $region22: #{tpu_custom_call.1} parent=1 // pred_check
      _
    $region23: #{tpu_custom_call.1} parent=1 // pred_check_branch
      %24 = sbr.rel (0) target = $region25
    $region24: #{tpu_custom_call.1} parent=1 // pred_region
      _
    $region25: #{tpu_custom_call.1} parent=1 // pred_fallthru
      _
    // Predicated region
    $region26: #{tpu_custom_call.1} parent=1 // pred_check
      _
    $region27: #{tpu_custom_call.1} parent=1 // pred_check_branch
      %26 = sbr.rel (0) target = $region29
    $region28: #{tpu_custom_call.1} parent=1 // pred_region
      _
    $region29: #{tpu_custom_call.1} parent=1 // pred_fallthru
      _
    %p28 = scmp.eq.s32.totalorder 0, 0
    // Predicated region
    $region30: #{tpu_custom_call.1} parent=1 // pred_check
      %p29 = pneg %p28
    $region31: #{tpu_custom_call.1} parent=1 // pred_check_branch
      %31 = sbr.rel (%p29) target = $region33
    $region32: #{tpu_custom_call.1} parent=1 // pred_region
      %v32 = vld [vmem:[%s6] sm:$0x1]
      %v34 = vperm.slane %v32, 0
      %vm36 = vcmask 261120
      %37 = vst.msk [vmem:[#allocation4] sm:$0xff] %vm36, %v34
    $region33: #{tpu_custom_call.1} parent=1 // pred_fallthru
      _
    %v38 = vld [vmem:[%s0] sm:$0xff]
    %v39 = vld [vmem:[%s0 + $0x8] sm:$0xff]
    %v40 = vld [vmem:[%s0 + $0x10] sm:$0xff]
    %v41 = vld [vmem:[%s0 + $0x18] sm:$0xff]
    %v42 = vld [vmem:[%s0 + $0x20] sm:$0xff]
    %v43 = vld [vmem:[%s0 + $0x28] sm:$0xff]
    %v44 = vld [vmem:[%s0 + $0x30] sm:$0xff]
    %v45 = vld [vmem:[%s0 + $0x38] sm:$0xff]
    %v46 = vpack.c.bf16 %v39, %v38
    %v47 = vpack.c.bf16 %v41, %v40
    %v48 = vpack.c.bf16 %v43, %v42
    %v49 = vpack.c.bf16 %v45, %v44
    %v50 = vld [vmem:[%s1] sm:$0xf]
    %v51 = vld [vmem:[%s4] sm:$0x1]
    %v53 = vperm.slane %v51, 0
    %vm55 = vcmask 64512
    %v57 = vsel %vm55, %v46, 0
    %v60 = vsel %vm55, %v47, 0
    %v63 = vsel %vm55, %v48, 0
    %v66 = vsel %vm55, %v49, 0
    %vm68 = vcmask 1043456
    %v70 = vsel %vm68, %v50, 0
    %72 = vmatpush.bf16.msra.mxu0 0
    %73 = vmatpush.bf16.msra.mxu0 0
    %74 = vmatpush.bf16.msra.mxu0 0
    %75 = vmatpush.bf16.msra.mxu0 0
    %76 = vmatpush.bf16.msra.mxu0 0
    %77 = vmatpush.bf16.msra.mxu0 0
    %78 = vmatpush.bf16.msra.mxu0 0
    %79 = vmatpush.bf16.msra.mxu0 %v70
    %80 = vmatmul.bf16.gmra.mxu0 %v57
    %v81 = vpop.f32.mrf.mxu0
    %v82 = vadd.f32 %v53, %v81
    %v83 = vpop.f32.mrf.mxu0
    %v84 = vadd.f32 %v53, %v83
    %85 = vmatmul.bf16.gmra.mxu0 %v60
    %v86 = vpop.f32.mrf.mxu0
    %v87 = vadd.f32 %v53, %v86
    %v88 = vpop.f32.mrf.mxu0
    %v89 = vadd.f32 %v53, %v88
    %90 = vmatmul.bf16.gmra.mxu0 %v63
    %v91 = vpop.f32.mrf.mxu0
    %v92 = vadd.f32 %v53, %v91
    %v93 = vpop.f32.mrf.mxu0
    %v94 = vadd.f32 %v53, %v93
    %95 = vmatmul.bf16.gmra.mxu0 %v66
    %v96 = vpop.f32.mrf.mxu0
    %v97 = vadd.f32 %v53, %v96
    %v98 = vpop.f32.mrf.mxu0
    %v99 = vadd.f32 %v53, %v98
    %100 = vdwg.mxu0
    %vm101 = vcmask 261120
    %102 = vst.msk [vmem:[#allocation2] sm:$0xff] %vm101, %v82
    %103 = vst.msk [vmem:[#allocation2 + $0x8] sm:$0xff] %vm101, %v84
    %104 = vst.msk [vmem:[#allocation2 + $0x10] sm:$0xff] %vm101, %v87
    %105 = vst.msk [vmem:[#allocation2 + $0x18] sm:$0xff] %vm101, %v89
    %106 = vst.msk [vmem:[#allocation2 + $0x20] sm:$0xff] %vm101, %v92
    %107 = vst.msk [vmem:[#allocation2 + $0x28] sm:$0xff] %vm101, %v94
    %108 = vst.msk [vmem:[#allocation2 + $0x30] sm:$0xff] %vm101, %v97
    %109 = vst.msk [vmem:[#allocation2 + $0x38] sm:$0xff] %vm101, %v99
    %v110 = vld [vmem:[%s0] sm:$0xff]
    %v111 = vld [vmem:[%s0 + $0x8] sm:$0xff]
    %v112 = vld [vmem:[%s0 + $0x10] sm:$0xff]
    %v113 = vld [vmem:[%s0 + $0x18] sm:$0xff]
    %v114 = vld [vmem:[%s0 + $0x20] sm:$0xff]
    %v115 = vld [vmem:[%s0 + $0x28] sm:$0xff]
    %v116 = vld [vmem:[%s0 + $0x30] sm:$0xff]
    %v117 = vld [vmem:[%s0 + $0x38] sm:$0xff]
    %v118 = vmul.f32 %v110, 0.99999
    %v119 = vmul.f32 %v111, 0.99999
    %v120 = vmul.f32 %v112, 0.99999
    %v121 = vmul.f32 %v113, 0.99999
    %v122 = vmul.f32 %v114, 0.99999
    %v123 = vmul.f32 %v115, 0.99999
    %v124 = vmul.f32 %v116, 0.99999
    %v125 = vmul.f32 %v117, 0.99999
    %126 = vst.msk [vmem:[#allocation3] sm:$0xff] %vm55, %v118
    %127 = vst.msk [vmem:[#allocation3 + $0x8] sm:$0xff] %vm55, %v119
    %128 = vst.msk [vmem:[#allocation3 + $0x10] sm:$0xff] %vm55, %v120
    %129 = vst.msk [vmem:[#allocation3 + $0x18] sm:$0xff] %vm55, %v121
    %130 = vst.msk [vmem:[#allocation3 + $0x20] sm:$0xff] %vm55, %v122
    %131 = vst.msk [vmem:[#allocation3 + $0x28] sm:$0xff] %vm55, %v123
    %132 = vst.msk [vmem:[#allocation3 + $0x30] sm:$0xff] %vm55, %v124
    %133 = vst.msk [vmem:[#allocation3 + $0x38] sm:$0xff] %vm55, %v125
    %v134 = vld [vmem:[%s2] sm:$0xf]
    %v135 = vld [vmem:[%s2 + $0x4] sm:$0xf]
    %v136 = vld [vmem:[%s2 + $0x8] sm:$0xf]
    %v137 = vld [vmem:[%s3] sm:$0xf]
    %v138 = vld [vmem:[%s3 + $0x4] sm:$0xf]
    %v139 = vld [vmem:[%s3 + $0x8] sm:$0xf]
    %v140 = vld [vmem:[%s3 + $0xc] sm:$0xf]
    %v141 = vld [vmem:[%s5] sm:$0x1]
    %v143 = vperm.slane %v141, 0
    %v145 = vld [vmem:[#allocation4] sm:$0xff]
    %v146 = vld [vmem:[#allocation2] sm:$0xff]
    %v147 = vpack.c.bf16 %v145, %v145
    %v151 = vunpack.c.l.b16 %v134
    %v152 = vunpack.c.l.b16 %v135
    %v153 = vunpack.c.l.b16 %v136
    %v154 = vpack.c.b16 %v152, %v151
    %v155 = vpack.c.b16 %v153, %v153
    %vm157 = vcmask 195584
    %v159 = vsel %vm157, %v147, 0
    %v162 = vsel %vm68, %v155, 0
    %164 = vmatpush.bf16.msra.mxu0 0
    %165 = vmatpush.bf16.msra.mxu0 0
    %166 = vmatpush.bf16.msra.mxu0 0
    %167 = vmatpush.bf16.msra.mxu0 0
    %168 = vmatpush.bf16.msra.mxu0 0
    %169 = vmatpush.bf16.msra.mxu0 0
    %170 = vmatpush.bf16.msra.mxu0 %v162
    %171 = vmatpush.bf16.msra.mxu0 %v154
    %172 = vmatmul.bf16.gmra.mxu0 %v159
    %v173 = vpop.f32.mrf.mxu0
    %v174 = vadd.f32 0.0, %v173
    %v175 = vpop.f32.mrf.mxu0
    %176 = vdwg.mxu0
    %v177 = vadd.f32 %v146, %v174
    %v178 = vmax.f32 %v177, 0.0
    %v179 = vpack.c.bf16 %v178, %v178
    %v184 = vunpack.c.l.b16 %v137
    %v185 = vunpack.c.l.b16 %v138
    %v186 = vunpack.c.l.b16 %v139
    %v187 = vunpack.c.l.b16 %v140
    %v188 = vpack.c.b16 %v185, %v184
    %v189 = vpack.c.b16 %v187, %v186
    %v193 = vsel %vm101, %v179, 0
    %195 = vmatpush.bf16.msra.mxu0 0
    %196 = vmatpush.bf16.msra.mxu0 0
    %197 = vmatpush.bf16.msra.mxu0 0
    %198 = vmatpush.bf16.msra.mxu0 0
    %199 = vmatpush.bf16.msra.mxu0 0
    %200 = vmatpush.bf16.msra.mxu0 0
    %201 = vmatpush.bf16.msra.mxu0 %v189
    %202 = vmatpush.bf16.msra.mxu0 %v188
    %203 = vmatmul.bf16.gmra.mxu0 %v193
    %v204 = vpop.f32.mrf.mxu0
    %v205 = vadd.f32 0.0, %v204
    %v206 = vpop.f32.mrf.mxu0
    %207 = vdwg.mxu0
    %v208 = vld [vmem:[#allocation3] sm:$0xff]
    %v209 = vmul.f32 %v145, 0.99999
    %211 = vrot.lane.b32.xlu0 %v209, 8
    %v212 = vpop.permute.xlu0 %211
    %v214 = vsel %vm55, %v208, %v212
    %v215 = vadd.f32 %v214, %v205
    %v216 = vadd.f32 %v215, %v143
    %s217 = scalar_lea.vmem [#allocation2], 8
    %v218 = vld [vmem:[%s217] sm:$0xff]
    %v219 = vpack.c.bf16 %v216, %v216
    %v221 = vsel %vm157, %v219, 0
    %223 = vmatpush.bf16.msra.mxu0 0
    %224 = vmatpush.bf16.msra.mxu0 0
    %225 = vmatpush.bf16.msra.mxu0 0
    %226 = vmatpush.bf16.msra.mxu0 0
    %227 = vmatpush.bf16.msra.mxu0 0
    %228 = vmatpush.bf16.msra.mxu0 0
    %229 = vmatpush.bf16.msra.mxu0 %v162
    %230 = vmatpush.bf16.msra.mxu0 %v154
    %231 = vmatmul.bf16.gmra.mxu0 %v221
    %v232 = vpop.f32.mrf.mxu0
    %v233 = vadd.f32 0.0, %v232
    %v234 = vpop.f32.mrf.mxu0
    %235 = vdwg.mxu0
    %v236 = vadd.f32 %v218, %v233
    %v237 = vmax.f32 %v236, 0.0
    %v238 = vpack.c.bf16 %v237, %v237
    %v240 = vsel %vm101, %v238, 0
    %242 = vmatpush.bf16.msra.mxu0 0
    %243 = vmatpush.bf16.msra.mxu0 0
    %244 = vmatpush.bf16.msra.mxu0 0
    %245 = vmatpush.bf16.msra.mxu0 0
    %246 = vmatpush.bf16.msra.mxu0 0
    %247 = vmatpush.bf16.msra.mxu0 0
    %248 = vmatpush.bf16.msra.mxu0 %v189
    %249 = vmatpush.bf16.msra.mxu0 %v188
    %250 = vmatmul.bf16.gmra.mxu0 %v240
    %v251 = vpop.f32.mrf.mxu0
    %v252 = vadd.f32 0.0, %v251
    %v253 = vpop.f32.mrf.mxu0
    %254 = vdwg.mxu0
    %s255 = scalar_lea.vmem [#allocation3], 8
    %v256 = vld [vmem:[%s255] sm:$0xff]
    %v257 = vmul.f32 %v216, 0.99999
    %259 = vrot.lane.b32.xlu0 %v257, 8
    %v260 = vpop.permute.xlu0 %259
    %v262 = vsel %vm55, %v256, %v260
    %v263 = vadd.f32 %v262, %v252
    %v264 = vadd.f32 %v263, %v143
    %s265 = scalar_lea.vmem [#allocation2], 16
    %v266 = vld [vmem:[%s265] sm:$0xff]
    %v267 = vpack.c.bf16 %v264, %v264
    %v269 = vsel %vm157, %v267, 0
    %271 = vmatpush.bf16.msra.mxu0 0
    %272 = vmatpush.bf16.msra.mxu0 0
    %273 = vmatpush.bf16.msra.mxu0 0
    %274 = vmatpush.bf16.msra.mxu0 0
    %275 = vmatpush.bf16.msra.mxu0 0
    %276 = vmatpush.bf16.msra.mxu0 0
    %277 = vmatpush.bf16.msra.mxu0 %v162
    %278 = vmatpush.bf16.msra.mxu0 %v154
    %279 = vmatmul.bf16.gmra.mxu0 %v269
    %v280 = vpop.f32.mrf.mxu0
    %v281 = vadd.f32 0.0, %v280
    %v282 = vpop.f32.mrf.mxu0
    %283 = vdwg.mxu0
    %v284 = vadd.f32 %v266, %v281
    %v285 = vmax.f32 %v284, 0.0
    %v286 = vpack.c.bf16 %v285, %v285
    %v288 = vsel %vm101, %v286, 0
    %290 = vmatpush.bf16.msra.mxu0 0
    %291 = vmatpush.bf16.msra.mxu0 0
    %292 = vmatpush.bf16.msra.mxu0 0
    %293 = vmatpush.bf16.msra.mxu0 0
    %294 = vmatpush.bf16.msra.mxu0 0
    %295 = vmatpush.bf16.msra.mxu0 0
    %296 = vmatpush.bf16.msra.mxu0 %v189
    %297 = vmatpush.bf16.msra.mxu0 %v188
    %298 = vmatmul.bf16.gmra.mxu0 %v288
    %v299 = vpop.f32.mrf.mxu0
    %v300 = vadd.f32 0.0, %v299
    %v301 = vpop.f32.mrf.mxu0
    %302 = vdwg.mxu0
    %s303 = scalar_lea.vmem [#allocation3], 16
    %v304 = vld [vmem:[%s303] sm:$0xff]
    %v305 = vmul.f32 %v264, 0.99999
    %307 = vrot.lane.b32.xlu0 %v305, 8
    %v308 = vpop.permute.xlu0 %307
    %v310 = vsel %vm55, %v304, %v308
    %v311 = vadd.f32 %v310, %v300
    %v312 = vadd.f32 %v311, %v143
    %s313 = scalar_lea.vmem [#allocation2], 24
    %v314 = vld [vmem:[%s313] sm:$0xff]
    %v315 = vpack.c.bf16 %v312, %v312
    %v317 = vsel %vm157, %v315, 0
    %319 = vmatpush.bf16.msra.mxu0 0
    %320 = vmatpush.bf16.msra.mxu0 0
    %321 = vmatpush.bf16.msra.mxu0 0
    %322 = vmatpush.bf16.msra.mxu0 0
    %323 = vmatpush.bf16.msra.mxu0 0
    %324 = vmatpush.bf16.msra.mxu0 0
    %325 = vmatpush.bf16.msra.mxu0 %v162
    %326 = vmatpush.bf16.msra.mxu0 %v154
    %327 = vmatmul.bf16.gmra.mxu0 %v317
    %v328 = vpop.f32.mrf.mxu0
    %v329 = vadd.f32 0.0, %v328
    %v330 = vpop.f32.mrf.mxu0
    %331 = vdwg.mxu0
    %v332 = vadd.f32 %v314, %v329
    %v333 = vmax.f32 %v332, 0.0
    %v334 = vpack.c.bf16 %v333, %v333
    %v336 = vsel %vm101, %v334, 0
    %338 = vmatpush.bf16.msra.mxu0 0
    %339 = vmatpush.bf16.msra.mxu0 0
    %340 = vmatpush.bf16.msra.mxu0 0
    %341 = vmatpush.bf16.msra.mxu0 0
    %342 = vmatpush.bf16.msra.mxu0 0
    %343 = vmatpush.bf16.msra.mxu0 0
    %344 = vmatpush.bf16.msra.mxu0 %v189
    %345 = vmatpush.bf16.msra.mxu0 %v188
    %346 = vmatmul.bf16.gmra.mxu0 %v336
    %v347 = vpop.f32.mrf.mxu0
    %v348 = vadd.f32 0.0, %v347
    %v349 = vpop.f32.mrf.mxu0
    %350 = vdwg.mxu0
    %s351 = scalar_lea.vmem [#allocation3], 24
    %v352 = vld [vmem:[%s351] sm:$0xff]
    %v353 = vmul.f32 %v312, 0.99999
    %355 = vrot.lane.b32.xlu0 %v353, 8
    %v356 = vpop.permute.xlu0 %355
    %v358 = vsel %vm55, %v352, %v356
    %v359 = vadd.f32 %v358, %v348
    %v360 = vadd.f32 %v359, %v143
    %s361 = scalar_lea.vmem [#allocation2], 32
    %v362 = vld [vmem:[%s361] sm:$0xff]
    %v363 = vpack.c.bf16 %v360, %v360
    %v365 = vsel %vm157, %v363, 0
    %367 = vmatpush.bf16.msra.mxu0 0
    %368 = vmatpush.bf16.msra.mxu0 0
    %369 = vmatpush.bf16.msra.mxu0 0
    %370 = vmatpush.bf16.msra.mxu0 0
    %371 = vmatpush.bf16.msra.mxu0 0
    %372 = vmatpush.bf16.msra.mxu0 0
    %373 = vmatpush.bf16.msra.mxu0 %v162
    %374 = vmatpush.bf16.msra.mxu0 %v154
    %375 = vmatmul.bf16.gmra.mxu0 %v365
    %v376 = vpop.f32.mrf.mxu0
    %v377 = vadd.f32 0.0, %v376
    %v378 = vpop.f32.mrf.mxu0
    %379 = vdwg.mxu0
    %v380 = vadd.f32 %v362, %v377
    %v381 = vmax.f32 %v380, 0.0
    %v382 = vpack.c.bf16 %v381, %v381
    %v384 = vsel %vm101, %v382, 0
    %386 = vmatpush.bf16.msra.mxu0 0
    %387 = vmatpush.bf16.msra.mxu0 0
    %388 = vmatpush.bf16.msra.mxu0 0
    %389 = vmatpush.bf16.msra.mxu0 0
    %390 = vmatpush.bf16.msra.mxu0 0
    %391 = vmatpush.bf16.msra.mxu0 0
    %392 = vmatpush.bf16.msra.mxu0 %v189
    %393 = vmatpush.bf16.msra.mxu0 %v188
    %394 = vmatmul.bf16.gmra.mxu0 %v384
    %v395 = vpop.f32.mrf.mxu0
    %v396 = vadd.f32 0.0, %v395
    %v397 = vpop.f32.mrf.mxu0
    %398 = vdwg.mxu0
    %s399 = scalar_lea.vmem [#allocation3], 32
    %v400 = vld [vmem:[%s399] sm:$0xff]
    %v401 = vmul.f32 %v360, 0.99999
    %403 = vrot.lane.b32.xlu0 %v401, 8
    %v404 = vpop.permute.xlu0 %403
    %v406 = vsel %vm55, %v400, %v404
    %v407 = vadd.f32 %v406, %v396
    %v408 = vadd.f32 %v407, %v143
    %s409 = scalar_lea.vmem [#allocation2], 40
    %v410 = vld [vmem:[%s409] sm:$0xff]
    %v411 = vpack.c.bf16 %v408, %v408
    %v413 = vsel %vm157, %v411, 0
    %415 = vmatpush.bf16.msra.mxu0 0
    %416 = vmatpush.bf16.msra.mxu0 0
    %417 = vmatpush.bf16.msra.mxu0 0
    %418 = vmatpush.bf16.msra.mxu0 0
    %419 = vmatpush.bf16.msra.mxu0 0
    %420 = vmatpush.bf16.msra.mxu0 0
    %421 = vmatpush.bf16.msra.mxu0 %v162
    %422 = vmatpush.bf16.msra.mxu0 %v154
    %423 = vmatmul.bf16.gmra.mxu0 %v413
    %v424 = vpop.f32.mrf.mxu0
    %v425 = vadd.f32 0.0, %v424
    %v426 = vpop.f32.mrf.mxu0
    %427 = vdwg.mxu0
    %v428 = vadd.f32 %v410, %v425
    %v429 = vmax.f32 %v428, 0.0
    %v430 = vpack.c.bf16 %v429, %v429
    %v432 = vsel %vm101, %v430, 0
    %434 = vmatpush.bf16.msra.mxu0 0
    %435 = vmatpush.bf16.msra.mxu0 0
    %436 = vmatpush.bf16.msra.mxu0 0
    %437 = vmatpush.bf16.msra.mxu0 0
    %438 = vmatpush.bf16.msra.mxu0 0
    %439 = vmatpush.bf16.msra.mxu0 0
    %440 = vmatpush.bf16.msra.mxu0 %v189
    %441 = vmatpush.bf16.msra.mxu0 %v188
    %442 = vmatmul.bf16.gmra.mxu0 %v432
    %v443 = vpop.f32.mrf.mxu0
    %v444 = vadd.f32 0.0, %v443
    %v445 = vpop.f32.mrf.mxu0
    %446 = vdwg.mxu0
    %s447 = scalar_lea.vmem [#allocation3], 40
    %v448 = vld [vmem:[%s447] sm:$0xff]
    %v449 = vmul.f32 %v408, 0.99999
    %451 = vrot.lane.b32.xlu0 %v449, 8
    %v452 = vpop.permute.xlu0 %451
    %v454 = vsel %vm55, %v448, %v452
    %v455 = vadd.f32 %v454, %v444
    %v456 = vadd.f32 %v455, %v143
    %s457 = scalar_lea.vmem [#allocation2], 48
    %v458 = vld [vmem:[%s457] sm:$0xff]
    %v459 = vpack.c.bf16 %v456, %v456
    %v461 = vsel %vm157, %v459, 0
    %463 = vmatpush.bf16.msra.mxu0 0
    %464 = vmatpush.bf16.msra.mxu0 0
    %465 = vmatpush.bf16.msra.mxu0 0
    %466 = vmatpush.bf16.msra.mxu0 0
    %467 = vmatpush.bf16.msra.mxu0 0
    %468 = vmatpush.bf16.msra.mxu0 0
    %469 = vmatpush.bf16.msra.mxu0 %v162
    %470 = vmatpush.bf16.msra.mxu0 %v154
    %471 = vmatmul.bf16.gmra.mxu0 %v461
    %v472 = vpop.f32.mrf.mxu0
    %v473 = vadd.f32 0.0, %v472
    %v474 = vpop.f32.mrf.mxu0
    %475 = vdwg.mxu0
    %v476 = vadd.f32 %v458, %v473
    %v477 = vmax.f32 %v476, 0.0
    %v478 = vpack.c.bf16 %v477, %v477
    %v480 = vsel %vm101, %v478, 0
    %482 = vmatpush.bf16.msra.mxu0 0
    %483 = vmatpush.bf16.msra.mxu0 0
    %484 = vmatpush.bf16.msra.mxu0 0
    %485 = vmatpush.bf16.msra.mxu0 0
    %486 = vmatpush.bf16.msra.mxu0 0
    %487 = vmatpush.bf16.msra.mxu0 0
    %488 = vmatpush.bf16.msra.mxu0 %v189
    %489 = vmatpush.bf16.msra.mxu0 %v188
    %490 = vmatmul.bf16.gmra.mxu0 %v480
    %v491 = vpop.f32.mrf.mxu0
    %v492 = vadd.f32 0.0, %v491
    %v493 = vpop.f32.mrf.mxu0
    %494 = vdwg.mxu0
    %s495 = scalar_lea.vmem [#allocation3], 48
    %v496 = vld [vmem:[%s495] sm:$0xff]
    %v497 = vmul.f32 %v456, 0.99999
    %499 = vrot.lane.b32.xlu0 %v497, 8
    %v500 = vpop.permute.xlu0 %499
    %v502 = vsel %vm55, %v496, %v500
    %v503 = vadd.f32 %v502, %v492
    %v504 = vadd.f32 %v503, %v143
    %s505 = scalar_lea.vmem [#allocation2], 56
    %v506 = vld [vmem:[%s505] sm:$0xff]
    %v507 = vpack.c.bf16 %v504, %v504
    %v509 = vsel %vm157, %v507, 0
    %511 = vmatpush.bf16.msra.mxu0 0
    %512 = vmatpush.bf16.msra.mxu0 0
    %513 = vmatpush.bf16.msra.mxu0 0
    %514 = vmatpush.bf16.msra.mxu0 0
    %515 = vmatpush.bf16.msra.mxu0 0
    %516 = vmatpush.bf16.msra.mxu0 0
    %517 = vmatpush.bf16.msra.mxu0 %v162
    %518 = vmatpush.bf16.msra.mxu0 %v154
    %519 = vmatmul.bf16.gmra.mxu0 %v509
    %v520 = vpop.f32.mrf.mxu0
    %v521 = vadd.f32 0.0, %v520
    %v522 = vpop.f32.mrf.mxu0
    %523 = vdwg.mxu0
    %v524 = vadd.f32 %v506, %v521
    %v525 = vmax.f32 %v524, 0.0
    %v526 = vpack.c.bf16 %v525, %v525
    %v528 = vsel %vm101, %v526, 0
    %530 = vmatpush.bf16.msra.mxu0 0
    %531 = vmatpush.bf16.msra.mxu0 0
    %532 = vmatpush.bf16.msra.mxu0 0
    %533 = vmatpush.bf16.msra.mxu0 0
    %534 = vmatpush.bf16.msra.mxu0 0
    %535 = vmatpush.bf16.msra.mxu0 0
    %536 = vmatpush.bf16.msra.mxu0 %v189
    %537 = vmatpush.bf16.msra.mxu0 %v188
    %538 = vmatmul.bf16.gmra.mxu0 %v528
    %v539 = vpop.f32.mrf.mxu0
    %v540 = vadd.f32 0.0, %v539
    %v541 = vpop.f32.mrf.mxu0
    %542 = vdwg.mxu0
    %s543 = scalar_lea.vmem [#allocation3], 56
    %v544 = vld [vmem:[%s543] sm:$0xff]
    %v545 = vmul.f32 %v504, 0.99999
    %547 = vrot.lane.b32.xlu0 %v545, 8
    %v548 = vpop.permute.xlu0 %547
    %v550 = vsel %vm55, %v544, %v548
    %v551 = vadd.f32 %v550, %v540
    %v552 = vadd.f32 %v551, %v143
    %553 = vst.msk [vmem:[#allocation4] sm:$0xff] %vm101, %v552
    // Predicated region
    $region34: #{tpu_custom_call.1} parent=1 // pred_check
      %p554 = pneg %p28
    $region35: #{tpu_custom_call.1} parent=1 // pred_check_branch
      %556 = sbr.rel (%p554) target = $region37
    $region36: #{tpu_custom_call.1} parent=1 // pred_region
      %557 = vst.msk [vmem:[#allocation5] sm:$0xff] %vm101, %v552
    $region37: #{tpu_custom_call.1} parent=1 // pred_fallthru
      _
    // Predicated region
    $region38: #{tpu_custom_call.1} parent=1 // pred_check
      _
    $region39: #{tpu_custom_call.1} parent=1 // pred_check_branch
      %559 = sbr.rel (0) target = $region41
    $region40: #{tpu_custom_call.1} parent=1 // pred_region
      %561 = vsyncadd [#allocation6], 0
      %s563 = sshll.u32 [#allocation5], 4
      %s564 = int_to_ptr.vmem [resolvable:$true] %s563
      %s565 = sshll.u32 %s7, 4
      %s566 = int_to_ptr.hbm [resolvable:$true] %s565
      %568 = dma.vmem_to_hbm [thread:$0]  %s564, 128, %s566, [#allocation6]
    $region41: #{tpu_custom_call.1} parent=1 // pred_fallthru
      _
    // Predicated region
    $region42: #{tpu_custom_call.1} parent=1 // pred_check
      _
    $region43: #{tpu_custom_call.1} parent=1 // pred_check_branch
      %570 = sbr.rel (0) target = $region45
    $region44: #{tpu_custom_call.1} parent=1 // pred_region
      %572 = dma.done [#allocation6], 128
    $region45: #{tpu_custom_call.1} parent=1 // pred_fallthru
      _
    %573 = vsyncpa [#allocation6], 1

</llo_original>
